<compile_context>
chip_gen: v7x
topology: tpu7x:2x2x1
jax: 0.10.0
libtpu: 0.0.40
codegen_flags: <defaults>
</compile_context>

<pallas_src>
import functools

import numpy as np

import jax
import jax.numpy as jnp
from jax.experimental import pallas as pl
from jax.experimental.pallas import tpu as pltpu


def _powerfe_kernel(x_ref, p_ref, out_ref, *,
                    batch, seg, c_in, c1, c2, feat,
                    r_w1, r_w2, r_wfc, r_f1, r_f2, r_misc, eps):
    """Whole PowerFE forward in one kernel invocation.

    x_ref : (B, Cin*L)  column index = ci*L + l  (channel-major, i.e. exactly
            x.reshape(B, -1) of the NCW input -> no wrapper transpose).
    p_ref : packed parameter slab (see make_powerfe_forward for layout).
    out   : (B, feat)   lane-dense output.
    """
    L = seg
    x = x_ref[...]                                          # (B, Cin*L)

    # ---- static views into the packed parameter slab (no data movement) ----
    w1t = p_ref[r_w1:r_w1 + c_in * L, 0:L * c1]             # (Cin*L, L*C1)
    w2t = p_ref[r_w2:r_w2 + L * c1, 0:L * c2]               # (L*C1,  L*C2)
    wfc = p_ref[r_wfc:r_wfc + feat, 0:L * c2]               # (F, L*C2) natural
    f1t = p_ref[r_f1:r_f1 + c1, 0:L * c1]                   # (C1, L*C1) [I I..I]
    f2t = p_ref[r_f2:r_f2 + c2, 0:L * c2]                   # (C2, L*C2) [I I..I]
    g1 = p_ref[r_misc + 0:r_misc + 1, 0:c1]                 # (1, C1)
    be1 = p_ref[r_misc + 1:r_misc + 2, 0:c1]                # (1, C1)
    g2 = p_ref[r_misc + 2:r_misc + 3, 0:c2]                 # (1, C2)
    be2 = p_ref[r_misc + 3:r_misc + 4, 0:c2]                # (1, C2)
    bfc = p_ref[r_misc + 4:r_misc + 5, 0:feat]              # (1, F)

    inv_n = 1.0 / float(batch * L)

    def bn_relu(pre, gamma, beta, fold_t):
        # pre: (B, L*ch).  BatchNorm1d with batch statistics (biased variance
        # over all batch*position samples per channel), affine, then ReLU.
        #
        # Position-fold AND batch reduction are fused into ONE MXU matmul
        # against the replicated-identity fold_t: rows 0..B-1 of `stacked`
        # are x, rows B..2B-1 are x*x.
        stacked = jnp.concatenate([pre, pre * pre], axis=0)          # (2B, L*ch)
        folded = jax.lax.dot_general(
            stacked, fold_t, (((1,), (1,)), ((), ())),
            preferred_element_type=jnp.float32)                      # (2B, ch)
        s = folded[0:1, :]
        q = folded[batch:batch + 1, :]
        for b in range(1, batch):                                    # B-1 adds
            s = s + folded[b:b + 1, :]
            q = q + folded[batch + b:batch + b + 1, :]
        mean = s * inv_n                                             # (1, ch)
        # One-pass variance E[x^2] - mean^2: fine at this tolerance, and better
        # conditioned now that the (mathematically no-op) conv biases are gone.
        var = q * inv_n - mean * mean
        scale = gamma * jax.lax.rsqrt(var + eps)                     # (1, ch)
        shift = beta - mean * scale                                  # (1, ch)
        ss = jnp.concatenate([scale, shift], axis=0)                 # (2, ch)
        # Re-broadcast per-channel scale/shift to (2, L*ch) with one more tiny
        # MXU matmul (replaces the old L-way lane concat).
        ssf = jnp.dot(ss, fold_t, preferred_element_type=jnp.float32)
        return jnp.maximum(pre * ssf[0:1, :] + ssf[1:2, :], 0.0)

    # Conv1 (block-banded weight: taps + positions fused into one matmul).
    # Conv biases are omitted: a per-channel constant added before a
    # batch-statistics BN is exactly cancelled by the mean subtraction.
    h1 = bn_relu(jnp.dot(x, w1t, preferred_element_type=jnp.float32),
                 g1, be1, f1t)                                       # (B, L*C1)
    h2 = bn_relu(jnp.dot(h1, w2t, preferred_element_type=jnp.float32),
                 g2, be2, f2t)                                       # (B, L*C2)
    # FC: contract on the last dim of both (trans_b) so wfc stays in its
    # natural (F, L*C2) row layout in the slab (smaller DMA).
    out_ref[...] = jax.lax.dot_general(
        h2, wfc, (((1,), (1,)), ((), ())),
        preferred_element_type=jnp.float32) + bfc


def _ru(n, m):
    return ((n + m - 1) // m) * m


def _banded_conv1_weight_t(w, L):
    """Block-banded, transposed weight for the FIRST Conv1d (k=3, 'same').

    Rows are CHANNEL-major (ci*L + lp) so the kernel consumes
    x.reshape(B, Cin*L) directly; cols are position-major (l*Cout + co).
    """
    w = np.asarray(w, np.float32)
    c_out, c_in, k = w.shape
    wt = np.zeros((c_in * L, L * c_out), np.float32)
    for l in range(L):
        for kk in range(k):
            lp = l + kk - 1
            if 0 <= lp < L:
                for ci in range(c_in):
                    wt[ci * L + lp, l * c_out:(l + 1) * c_out] = w[:, ci, kk]
    return wt


def _banded_conv_weight_t(w, L):
    """Block-banded, transposed weight for Conv1d (k=3, 'same').

    Rows position-major (lp*Cin + ci) — matches the kernel's internal
    activation layout; cols position-major (l*Cout + co).
    """
    w = np.asarray(w, np.float32)
    c_out, c_in, k = w.shape
    wt = np.zeros((L * c_in, L * c_out), np.float32)
    for l in range(L):
        for kk in range(k):
            lp = l + kk - 1
            if 0 <= lp < L:
                wt[lp * c_in:(lp + 1) * c_in,
                   l * c_out:(l + 1) * c_out] = w[:, :, kk].T
    return wt


def _fold_t(ch, L):
    """Replicated-identity fold matrix, shape (ch, L*ch): [I I ... I]."""
    return np.tile(np.eye(ch, dtype=np.float32), (1, L))


def make_powerfe_forward(params, *, seg_num, band_num, feat_dim, eps=1e-5):
    """Builds the packed parameter slab ONCE and returns a jitted forward(x)."""
    L, c_in = seg_num, band_num
    c1, c2 = band_num * 2, band_num * 4

    # One-time, NumPy, off the hot path.
    w1t = _banded_conv1_weight_t(params["w1"], L)            # (Cin*L, L*C1)
    w2t = _banded_conv_weight_t(params["w2"], L)             # (L*C1,  L*C2)
    wfc_nat = (np.asarray(params["wfc"], np.float32)
               .reshape(feat_dim, c2, L)
               .transpose(0, 2, 1)
               .reshape(feat_dim, L * c2))                   # (F, L*C2)
    f1t = _fold_t(c1, L)                                     # (C1, L*C1)
    f2t = _fold_t(c2, L)                                     # (C2, L*C2)

    # ---- pack everything into ONE lane-padded f32 slab (one DMA) ----
    width = _ru(max(L * c1, L * c2, feat_dim), 128)
    r_w1 = 0
    r_w2 = _ru(r_w1 + c_in * L, 8)
    r_wfc = _ru(r_w2 + L * c1, 8)
    r_f1 = _ru(r_wfc + feat_dim, 8)
    r_f2 = _ru(r_f1 + c1, 8)
    r_misc = _ru(r_f2 + c2, 8)
    n_rows = _ru(r_misc + 5, 8)

    slab = np.zeros((n_rows, width), np.float32)
    slab[r_w1:r_w1 + c_in * L, 0:L * c1] = w1t
    slab[r_w2:r_w2 + L * c1, 0:L * c2] = w2t
    slab[r_wfc:r_wfc + feat_dim, 0:L * c2] = wfc_nat
    slab[r_f1:r_f1 + c1, 0:L * c1] = f1t
    slab[r_f2:r_f2 + c2, 0:L * c2] = f2t
    slab[r_misc + 0, 0:c1] = np.asarray(params["g1"], np.float32)
    slab[r_misc + 1, 0:c1] = np.asarray(params["be1"], np.float32)
    slab[r_misc + 2, 0:c2] = np.asarray(params["g2"], np.float32)
    slab[r_misc + 3, 0:c2] = np.asarray(params["be2"], np.float32)
    slab[r_misc + 4, 0:feat_dim] = np.asarray(params["bfc"], np.float32)
    # Conv biases b1/b2 intentionally NOT packed (no-op under batch-stat BN).
    slab_dev = jax.device_put(jnp.asarray(slab))

    vspec = pl.BlockSpec(memory_space=pltpu.MemorySpace.VMEM)

    @jax.jit
    def _fwd(x, p):
        b_sz = x.shape[0]
        # NCW (B, Cin, L) -> (B, Cin*L): a free reshape (channel-major rows).
        x_bl = x.reshape(b_sz, c_in * L).astype(jnp.float32)
        kernel = functools.partial(
            _powerfe_kernel, batch=b_sz, seg=L, c_in=c_in, c1=c1, c2=c2,
            feat=feat_dim, r_w1=r_w1, r_w2=r_w2, r_wfc=r_wfc, r_f1=r_f1,
            r_f2=r_f2, r_misc=r_misc, eps=eps)
        flops = (2 * b_sz * (c_in * L * L * c1 + L * c1 * L * c2
                             + L * c2 * feat_dim)
                 + 2 * 2 * b_sz * (L * c1 * c1 + L * c2 * c2))
        bytes_accessed = (x_bl.size + p.size + b_sz * feat_dim) * 4
        return pl.pallas_call(
            kernel,
            out_shape=jax.ShapeDtypeStruct((b_sz, feat_dim), jnp.float32),
            in_specs=[vspec, vspec],
            out_specs=vspec,
            cost_estimate=pl.CostEstimate(
                flops=flops, transcendentals=0, bytes_accessed=bytes_accessed),
        )(x_bl, p)

    def forward(x):
        return _fwd(x, slab_dev)

    return forward


def powerfe_reference(x, params, eps=1e-5):
    """Pure-JAX reference mirroring the PyTorch module (NCW layout)."""
    w1, b1, g1, be1 = params["w1"], params["b1"], params["g1"], params["be1"]
    w2, b2, g2, be2 = params["w2"], params["b2"], params["g2"], params["be2"]
    wfc, bfc = params["wfc"], params["bfc"]

    def conv1d_same(h, w, b):
        L = h.shape[2]
        hp = jnp.pad(h, ((0, 0), (0, 0), (1, 1)))
        y = sum(jnp.einsum('oc,bcl->bol', w[:, :, k], hp[:, :, k:k + L])
                for k in range(3))
        return y + b[None, :, None]

    def bn_relu(h, g, be):
        mean = h.mean(axis=(0, 2), keepdims=True)
        var = ((h - mean) ** 2).mean(axis=(0, 2), keepdims=True)
        return jax.nn.relu(
            g[None, :, None] * (h - mean) / jnp.sqrt(var + eps)
            + be[None, :, None])

    h = bn_relu(conv1d_same(x, w1, b1), g1, be1)
    h = bn_relu(conv1d_same(h, w2, b2), g2, be2)
    h = h.reshape(h.shape[0], -1)
    return h @ wfc.T + bfc[None, :]


if __name__ == "__main__":
    SEG, BAND, FEAT, BATCH = 16, 4, 32, 2
    C1, C2 = BAND * 2, BAND * 4

    key = jax.random.PRNGKey(0)
    ks = jax.random.split(key, 11)
    params = {
        "w1": 0.3 * jax.random.normal(ks[0], (C1, BAND, 3), jnp.float32),
        "b1": 0.1 * jax.random.normal(ks[1], (C1,), jnp.float32),
        "g1": 1.0 + 0.1 * jax.random.normal(ks[2], (C1,), jnp.float32),
        "be1": 0.1 * jax.random.normal(ks[3], (C1,), jnp.float32),
        "w2": 0.3 * jax.random.normal(ks[4], (C2, C1, 3), jnp.float32),
        "b2": 0.1 * jax.random.normal(ks[5], (C2,), jnp.float32),
        "g2": 1.0 + 0.1 * jax.random.normal(ks[6], (C2,), jnp.float32),
        "be2": 0.1 * jax.random.normal(ks[7], (C2,), jnp.float32),
        "wfc": 0.1 * jax.random.normal(ks[8], (FEAT, SEG * C2), jnp.float32),
        "bfc": 0.1 * jax.random.normal(ks[9], (FEAT,), jnp.float32),
    }
    x = jax.random.normal(ks[10], (BATCH, BAND, SEG), jnp.float32)

    forward = make_powerfe_forward(params, seg_num=SEG, band_num=BAND,
                                   feat_dim=FEAT)
    out = jax.block_until_ready(forward(x))

    ref = powerfe_reference(x, params)
    assert out.shape == (BATCH, FEAT), out.shape
    max_err = float(jnp.max(jnp.abs(out - ref)))
    assert max_err < 5e-4, f"mismatch vs reference: max abs err {max_err}"

    print("KERNEL_OK")
</pallas_src>

<mosaic_0001>
module attributes {stable_mosaic.version = 11 : i64} {
  func.func @_powerfe_kernel(%arg0: memref<2x64xf32, #tpu.memory_space<vmem>>, %arg1: memref<256x256xf32, #tpu.memory_space<vmem>>, %arg2: memref<2x32xf32, #tpu.memory_space<vmem>>) attributes {dimension_semantics = [], scalar_prefetch = 0 : i64, scratch_operands = 0 : i64, tpu.core_type = #tpu.core_type<tc>} {
    %c0 = arith.constant 0 : index
    %c0_0 = arith.constant 0 : index
    %0 = vector.load %arg0[%c0, %c0_0] : memref<2x64xf32, #tpu.memory_space<vmem>>, vector<2x64xf32>
    %c0_1 = arith.constant 0 : index
    %c0_2 = arith.constant 0 : index
    %1 = vector.load %arg1[%c0_1, %c0_2] : memref<256x256xf32, #tpu.memory_space<vmem>>, vector<64x128xf32>
    %c64 = arith.constant 64 : index
    %c0_3 = arith.constant 0 : index
    %2 = vector.load %arg1[%c64, %c0_3] : memref<256x256xf32, #tpu.memory_space<vmem>>, vector<128x256xf32>
    %c192 = arith.constant 192 : index
    %c0_4 = arith.constant 0 : index
    %3 = vector.load %arg1[%c192, %c0_4] : memref<256x256xf32, #tpu.memory_space<vmem>>, vector<32x256xf32>
    %c224 = arith.constant 224 : index
    %c0_5 = arith.constant 0 : index
    %4 = vector.load %arg1[%c224, %c0_5] : memref<256x256xf32, #tpu.memory_space<vmem>>, vector<8x128xf32>
    %c232 = arith.constant 232 : index
    %c0_6 = arith.constant 0 : index
    %5 = vector.load %arg1[%c232, %c0_6] : memref<256x256xf32, #tpu.memory_space<vmem>>, vector<16x256xf32>
    %c248 = arith.constant 248 : index
    %c0_7 = arith.constant 0 : index
    %6 = vector.load %arg1[%c248, %c0_7] : memref<256x256xf32, #tpu.memory_space<vmem>>, vector<1x8xf32>
    %c249 = arith.constant 249 : index
    %c0_8 = arith.constant 0 : index
    %7 = vector.load %arg1[%c249, %c0_8] : memref<256x256xf32, #tpu.memory_space<vmem>>, vector<1x8xf32>
    %c250 = arith.constant 250 : index
    %c0_9 = arith.constant 0 : index
    %8 = vector.load %arg1[%c250, %c0_9] : memref<256x256xf32, #tpu.memory_space<vmem>>, vector<1x16xf32>
    %c251 = arith.constant 251 : index
    %c0_10 = arith.constant 0 : index
    %9 = vector.load %arg1[%c251, %c0_10] : memref<256x256xf32, #tpu.memory_space<vmem>>, vector<1x16xf32>
    %c252 = arith.constant 252 : index
    %c0_11 = arith.constant 0 : index
    %10 = vector.load %arg1[%c252, %c0_11] : memref<256x256xf32, #tpu.memory_space<vmem>>, vector<1x32xf32>
    %cst = arith.constant dense<0.000000e+00> : vector<2x128xf32>
    %11 = tpu.matmul %0, %1, %cst {dimension_numbers = #tpu.dot_dimension_numbers<[1], [0], [0], [1], [0, 0, 1, 1], [], []>} : vector<2x64xf32>, vector<64x128xf32>, vector<2x128xf32> -> vector<2x128xf32>
    %12 = arith.mulf %11, %11 : vector<2x128xf32>
    %13 = tpu.concatenate %11, %12 in 0 : vector<2x128xf32>, vector<2x128xf32> -> vector<4x128xf32>
    %cst_12 = arith.constant dense<0.000000e+00> : vector<4x8xf32>
    %14 = tpu.matmul %13, %4, %cst_12 {dimension_numbers = #tpu.dot_dimension_numbers<[1], [1], [0], [0], [0, 0, 1, 0], [], []>} : vector<4x128xf32>, vector<8x128xf32>, vector<4x8xf32> -> vector<4x8xf32>
    %15 = vector.extract_strided_slice %14 {offsets = [0, 0], sizes = [1, 8], strides = [1, 1]} : vector<4x8xf32> to vector<1x8xf32>
    %16 = vector.extract_strided_slice %14 {offsets = [2, 0], sizes = [1, 8], strides = [1, 1]} : vector<4x8xf32> to vector<1x8xf32>
    %17 = vector.extract_strided_slice %14 {offsets = [1, 0], sizes = [1, 8], strides = [1, 1]} : vector<4x8xf32> to vector<1x8xf32>
    %18 = arith.addf %15, %17 : vector<1x8xf32>
    %19 = vector.extract_strided_slice %14 {offsets = [3, 0], sizes = [1, 8], strides = [1, 1]} : vector<4x8xf32> to vector<1x8xf32>
    %20 = arith.addf %16, %19 : vector<1x8xf32>
    %cst_13 = arith.constant 3.125000e-02 : f32
    %21 = vector.broadcast %cst_13 : f32 to vector<1x8xf32>
    %22 = arith.mulf %18, %21 : vector<1x8xf32>
    %cst_14 = arith.constant 3.125000e-02 : f32
    %23 = vector.broadcast %cst_14 : f32 to vector<1x8xf32>
    %24 = arith.mulf %20, %23 : vector<1x8xf32>
    %25 = arith.mulf %22, %22 : vector<1x8xf32>
    %26 = arith.subf %24, %25 : vector<1x8xf32>
    %cst_15 = arith.constant 9.99999974E-6 : f32
    %27 = vector.broadcast %cst_15 : f32 to vector<1x8xf32>
    %28 = arith.addf %26, %27 : vector<1x8xf32>
    %29 = math.rsqrt %28 : vector<1x8xf32>
    %30 = arith.mulf %6, %29 : vector<1x8xf32>
    %31 = arith.mulf %22, %30 : vector<1x8xf32>
    %32 = arith.subf %7, %31 : vector<1x8xf32>
    %33 = tpu.concatenate %30, %32 in 0 : vector<1x8xf32>, vector<1x8xf32> -> vector<2x8xf32>
    %cst_16 = arith.constant dense<0.000000e+00> : vector<2x128xf32>
    %34 = tpu.matmul %33, %4, %cst_16 {dimension_numbers = #tpu.dot_dimension_numbers<[1], [0], [0], [1], [0, 0, 1, 1], [], []>} : vector<2x8xf32>, vector<8x128xf32>, vector<2x128xf32> -> vector<2x128xf32>
    %35 = vector.extract_strided_slice %34 {offsets = [0, 0], sizes = [1, 128], strides = [1, 1]} : vector<2x128xf32> to vector<1x128xf32>
    %36 = vector.broadcast %35 : vector<1x128xf32> to vector<2x128xf32>
    %37 = arith.mulf %11, %36 : vector<2x128xf32>
    %38 = vector.extract_strided_slice %34 {offsets = [1, 0], sizes = [1, 128], strides = [1, 1]} : vector<2x128xf32> to vector<1x128xf32>
    %39 = vector.broadcast %38 : vector<1x128xf32> to vector<2x128xf32>
    %40 = arith.addf %37, %39 : vector<2x128xf32>
    %cst_17 = arith.constant 0.000000e+00 : f32
    %41 = vector.broadcast %cst_17 : f32 to vector<2x128xf32>
    %42 = arith.maximumf %40, %41 : vector<2x128xf32>
    %cst_18 = arith.constant dense<0.000000e+00> : vector<2x256xf32>
    %43 = tpu.matmul %42, %2, %cst_18 {dimension_numbers = #tpu.dot_dimension_numbers<[1], [0], [0], [1], [0, 0, 1, 1], [], []>} : vector<2x128xf32>, vector<128x256xf32>, vector<2x256xf32> -> vector<2x256xf32>
    %44 = arith.mulf %43, %43 : vector<2x256xf32>
    %45 = tpu.concatenate %43, %44 in 0 : vector<2x256xf32>, vector<2x256xf32> -> vector<4x256xf32>
    %cst_19 = arith.constant dense<0.000000e+00> : vector<4x16xf32>
    %46 = tpu.matmul %45, %5, %cst_19 {dimension_numbers = #tpu.dot_dimension_numbers<[1], [1], [0], [0], [0, 0, 1, 0], [], []>} : vector<4x256xf32>, vector<16x256xf32>, vector<4x16xf32> -> vector<4x16xf32>
    %47 = vector.extract_strided_slice %46 {offsets = [0, 0], sizes = [1, 16], strides = [1, 1]} : vector<4x16xf32> to vector<1x16xf32>
    %48 = vector.extract_strided_slice %46 {offsets = [2, 0], sizes = [1, 16], strides = [1, 1]} : vector<4x16xf32> to vector<1x16xf32>
    %49 = vector.extract_strided_slice %46 {offsets = [1, 0], sizes = [1, 16], strides = [1, 1]} : vector<4x16xf32> to vector<1x16xf32>
    %50 = arith.addf %47, %49 : vector<1x16xf32>
    %51 = vector.extract_strided_slice %46 {offsets = [3, 0], sizes = [1, 16], strides = [1, 1]} : vector<4x16xf32> to vector<1x16xf32>
    %52 = arith.addf %48, %51 : vector<1x16xf32>
    %cst_20 = arith.constant 3.125000e-02 : f32
    %53 = vector.broadcast %cst_20 : f32 to vector<1x16xf32>
    %54 = arith.mulf %50, %53 : vector<1x16xf32>
    %cst_21 = arith.constant 3.125000e-02 : f32
    %55 = vector.broadcast %cst_21 : f32 to vector<1x16xf32>
    %56 = arith.mulf %52, %55 : vector<1x16xf32>
    %57 = arith.mulf %54, %54 : vector<1x16xf32>
    %58 = arith.subf %56, %57 : vector<1x16xf32>
    %cst_22 = arith.constant 9.99999974E-6 : f32
    %59 = vector.broadcast %cst_22 : f32 to vector<1x16xf32>
    %60 = arith.addf %58, %59 : vector<1x16xf32>
    %61 = math.rsqrt %60 : vector<1x16xf32>
    %62 = arith.mulf %8, %61 : vector<1x16xf32>
    %63 = arith.mulf %54, %62 : vector<1x16xf32>
    %64 = arith.subf %9, %63 : vector<1x16xf32>
    %65 = tpu.concatenate %62, %64 in 0 : vector<1x16xf32>, vector<1x16xf32> -> vector<2x16xf32>
    %cst_23 = arith.constant dense<0.000000e+00> : vector<2x256xf32>
    %66 = tpu.matmul %65, %5, %cst_23 {dimension_numbers = #tpu.dot_dimension_numbers<[1], [0], [0], [1], [0, 0, 1, 1], [], []>} : vector<2x16xf32>, vector<16x256xf32>, vector<2x256xf32> -> vector<2x256xf32>
    %67 = vector.extract_strided_slice %66 {offsets = [0, 0], sizes = [1, 256], strides = [1, 1]} : vector<2x256xf32> to vector<1x256xf32>
    %68 = vector.broadcast %67 : vector<1x256xf32> to vector<2x256xf32>
    %69 = arith.mulf %43, %68 : vector<2x256xf32>
    %70 = vector.extract_strided_slice %66 {offsets = [1, 0], sizes = [1, 256], strides = [1, 1]} : vector<2x256xf32> to vector<1x256xf32>
    %71 = vector.broadcast %70 : vector<1x256xf32> to vector<2x256xf32>
    %72 = arith.addf %69, %71 : vector<2x256xf32>
    %cst_24 = arith.constant 0.000000e+00 : f32
    %73 = vector.broadcast %cst_24 : f32 to vector<2x256xf32>
    %74 = arith.maximumf %72, %73 : vector<2x256xf32>
    %cst_25 = arith.constant dense<0.000000e+00> : vector<2x32xf32>
    %75 = tpu.matmul %74, %3, %cst_25 {dimension_numbers = #tpu.dot_dimension_numbers<[1], [1], [0], [0], [0, 0, 1, 0], [], []>} : vector<2x256xf32>, vector<32x256xf32>, vector<2x32xf32> -> vector<2x32xf32>
    %76 = vector.broadcast %10 : vector<1x32xf32> to vector<2x32xf32>
    %77 = arith.addf %75, %76 : vector<2x32xf32>
    %c0_26 = arith.constant 0 : index
    %c0_27 = arith.constant 0 : index
    %78 = vector.load %arg2[%c0_26, %c0_27] : memref<2x32xf32, #tpu.memory_space<vmem>>, vector<2x32xf32>
    tpu.vector_store %arg2[%c0_26, %c0_27], %77 {strides = array<i32>} : memref<2x32xf32, #tpu.memory_space<vmem>>, vector<2x32xf32>,
    return
  }
}

</mosaic_0001>

<llo_original>
// kernel: _fwd.1
$region0: #{_fwd.1}
  #allocation0 [shape = 'u32[]', space=smem, size = 0x4, offset = 0x4, fixed_abs, tag = 'smem constant byte address 0x4 - core index']
  #allocation1 [shape = 'u32[144,128]{1,0:T(1,128)}', space=vmem, size = 0x12000, scoped, tag = 'internal scratch']
  %s0 = inlined_call_operand.vmem [shape: f32[2,64], index: 0, kind: input, shape index: {}]
  %s1 = inlined_call_operand.hbm [shape: f32[256,256], index: 1, kind: input, shape index: {}]
  %s2 = inlined_call_operand.hbm [shape: f32[2,32], index: 2, kind: output, shape index: {}]
  %s3 = sld [smem:[#allocation0]]
  $region22: #{_fwd.1} parent=0
    _
  %s5 = ssub.s32 1, %s3
  %s6 = scalar_select 0, %s5, %s3
  $region1: #{_fwd.1} parent=0
    #allocation2 [shape = 'u8[262144]{0}', space=vmem, size = 0x40000, scoped, tag = 'input window, operand 1, single buffered']
    #allocation3 [shape = 's32[1]{0}', space=sflag, size = 0x4, scoped, tag = 'scoped memory for _fwd.1']
    #allocation4 [shape = 's32[1]{0}', space=sflag, size = 0x4, scoped, tag = 'scoped memory for _fwd.1']
    #allocation5 [shape = 'u8[1024]{0}', space=vmem, size = 0x400, scoped, tag = 'output window, operand 0, single buffered']
    %7 = vsyncpa [#allocation3], 0
    %8 = vsyncpa [#allocation4], 0
    // Predicated region
    $region2: #{_fwd.1} parent=1 // pred_check
      _
    $region3: #{_fwd.1} parent=1 // pred_check_branch
      %10 = sbr.rel (0) target = $region5
    $region4: #{_fwd.1} parent=1 // pred_region
      _
    $region5: #{_fwd.1} parent=1 // pred_fallthru
      _
    // Predicated region
    $region6: #{_fwd.1} parent=1 // pred_check
      _
    $region7: #{_fwd.1} parent=1 // pred_check_branch
      %12 = sbr.rel (0) target = $region9
    $region8: #{_fwd.1} parent=1 // pred_region
      %s14 = ssub.s32 8192, 8192
      %15 = vsyncadd [#allocation3], %s14
      %s16 = sshll.u32 [#allocation2], 4
      %s17 = int_to_ptr.vmem [resolvable:$true] %s16
      %22 = dma.hbm_to_vmem [thread:$0]  %s1, 8192, %s17, [#allocation3], 256, 256, 16
    $region9: #{_fwd.1} parent=1 // pred_fallthru
      _
    // Predicated region
    $region10: #{_fwd.1} parent=1 // pred_check
      _
    $region11: #{_fwd.1} parent=1 // pred_check_branch
      %24 = sbr.rel (0) target = $region13
    $region12: #{_fwd.1} parent=1 // pred_region
      %25 = dma.done [#allocation3], 8192
    $region13: #{_fwd.1} parent=1 // pred_fallthru
      _
    %v26 = vld [vmem:[%s0] sm:$0x3]
    %v27 = vld [vmem:[#allocation2] sm:$0xff]
    %v28 = vld [vmem:[#allocation2 + $0x10] sm:$0xff]
    %v29 = vld [vmem:[#allocation2 + $0x20] sm:$0xff]
    %v30 = vld [vmem:[#allocation2 + $0x30] sm:$0xff]
    %v31 = vld [vmem:[#allocation2 + $0x40] sm:$0xff]
    %v32 = vld [vmem:[#allocation2 + $0x50] sm:$0xff]
    %v33 = vld [vmem:[#allocation2 + $0x60] sm:$0xff]
    %v34 = vld [vmem:[#allocation2 + $0x70] sm:$0xff]
    %v35 = vld [vmem:[#allocation2 + $0x80] sm:$0xff]
    %v36 = vld [vmem:[#allocation2 + $0x88] sm:$0xff]
    %v37 = vld [vmem:[#allocation2 + $0x90] sm:$0xff]
    %v38 = vld [vmem:[#allocation2 + $0x98] sm:$0xff]
    %v39 = vld [vmem:[#allocation2 + $0xa0] sm:$0xff]
    %v40 = vld [vmem:[#allocation2 + $0xa8] sm:$0xff]
    %v41 = vld [vmem:[#allocation2 + $0xb0] sm:$0xff]
    %v42 = vld [vmem:[#allocation2 + $0xb8] sm:$0xff]
    %v43 = vld [vmem:[#allocation2 + $0xc0] sm:$0xff]
    %v44 = vld [vmem:[#allocation2 + $0xc8] sm:$0xff]
    %v45 = vld [vmem:[#allocation2 + $0xd0] sm:$0xff]
    %v46 = vld [vmem:[#allocation2 + $0xd8] sm:$0xff]
    %v47 = vld [vmem:[#allocation2 + $0xe0] sm:$0xff]
    %v48 = vld [vmem:[#allocation2 + $0xe8] sm:$0xff]
    %v49 = vld [vmem:[#allocation2 + $0xf0] sm:$0xff]
    %v50 = vld [vmem:[#allocation2 + $0xf8] sm:$0xff]
    %v51 = vld [vmem:[#allocation2 + $0x100] sm:$0xff]
    %v52 = vld [vmem:[#allocation2 + $0x108] sm:$0xff]
    %v53 = vld [vmem:[#allocation2 + $0x110] sm:$0xff]
    %v54 = vld [vmem:[#allocation2 + $0x118] sm:$0xff]
    %v55 = vld [vmem:[#allocation2 + $0x120] sm:$0xff]
    %v56 = vld [vmem:[#allocation2 + $0x128] sm:$0xff]
    %v57 = vld [vmem:[#allocation2 + $0x130] sm:$0xff]
    %v58 = vld [vmem:[#allocation2 + $0x138] sm:$0xff]
    %v59 = vld [vmem:[#allocation2 + $0x140] sm:$0xff]
    %v60 = vld [vmem:[#allocation2 + $0x148] sm:$0xff]
    %v61 = vld [vmem:[#allocation2 + $0x150] sm:$0xff]
    %v62 = vld [vmem:[#allocation2 + $0x158] sm:$0xff]
    %v63 = vld [vmem:[#allocation2 + $0x160] sm:$0xff]
    %v64 = vld [vmem:[#allocation2 + $0x168] sm:$0xff]
    %v65 = vld [vmem:[#allocation2 + $0x170] sm:$0xff]
    %v66 = vld [vmem:[#allocation2 + $0x178] sm:$0xff]
    %v67 = vld [vmem:[#allocation2 + $0x180] sm:$0xff]
    %v68 = vld [vmem:[#allocation2 + $0x188] sm:$0xff]
    %v69 = vld [vmem:[#allocation2 + $0x190] sm:$0xff]
    %v70 = vld [vmem:[#allocation2 + $0x198] sm:$0xff]
    %v71 = vld [vmem:[#allocation2 + $0x1a0] sm:$0xff]
    %v72 = vld [vmem:[#allocation2 + $0x1a8] sm:$0xff]
    %v73 = vld [vmem:[#allocation2 + $0x1b0] sm:$0xff]
    %v74 = vld [vmem:[#allocation2 + $0x1b8] sm:$0xff]
    %v75 = vld [vmem:[#allocation2 + $0x1c0] sm:$0xff]
    %v76 = vld [vmem:[#allocation2 + $0x1d0] sm:$0xff]
    %v77 = vld [vmem:[#allocation2 + $0x1d8] sm:$0xff]
    %v78 = vld [vmem:[#allocation2 + $0x1e0] sm:$0xff]
    %v79 = vld [vmem:[#allocation2 + $0x1e8] sm:$0xff]
    %v80 = vld [vmem:[#allocation2 + $0x1f0] ss:$0 sm:$0xff]
    %v81 = vld [vmem:[#allocation2 + $0x1f1] ss:$0 sm:$0xff]
    %v82 = vld [vmem:[#allocation2 + $0x1f2] ss:$0 sm:$0xff]
    %v83 = vld [vmem:[#allocation2 + $0x1f3] ss:$0 sm:$0xff]
    %v84 = vld [vmem:[#allocation2 + $0x1f4] ss:$0 sm:$0xff]
    %vm85 = vcmask 523264
    %v87 = vsel %vm85, %v26, 0
    %89 = vmatprep.subr.mxu0 0.0
    %90 = vmatpush1.msra.mxu0 %v27
    %91 = vmatprep.subr.mxu0 0.0
    %92 = vmatpush1.msra.mxu0 %v28
    %93 = vmatprep.subr.mxu0 0.0
    %94 = vmatpush1.msra.mxu0 %v29
    %95 = vmatprep.subr.mxu0 0.0
    %96 = vmatpush1.msra.mxu0 %v30
    %97 = vmatprep.subr.mxu0 0.0
    %98 = vmatpush1.msra.mxu0 %v31
    %99 = vmatprep.subr.mxu0 0.0
    %100 = vmatpush1.msra.mxu0 %v32
    %101 = vmatprep.subr.mxu0 0.0
    %102 = vmatpush1.msra.mxu0 %v33
    %103 = vmatprep.subr.mxu0 0.0
    %104 = vmatpush1.msra.mxu0 %v34
    %105 = vmatprep.subr.mxu0 0.0
    %106 = vmatpush1.msra.mxu0 0.0
    %107 = vmatprep.subr.mxu0 0.0
    %108 = vmatpush1.msra.mxu0 0.0
    %109 = vmatprep.subr.mxu0 0.0
    %110 = vmatpush1.msra.mxu0 0.0
    %111 = vmatprep.subr.mxu0 0.0
    %112 = vmatpush1.msra.mxu0 0.0
    %113 = vmatprep.subr.mxu0 0.0
    %114 = vmatpush1.msra.mxu0 0.0
    %115 = vmatprep.subr.mxu0 0.0
    %116 = vmatpush1.msra.mxu0 0.0
    %117 = vmatprep.subr.mxu0 0.0
    %118 = vmatpush1.msra.mxu0 0.0
    %119 = vmatprep.subr.mxu0 0.0
    %120 = vmatpush1.msra.mxu0 0.0
    %121 = vmatprep.subr.mxu0 0.0
    %122 = vmatpush1.msra.mxu0 0.0
    %123 = vmatprep.subr.mxu0 0.0
    %124 = vmatpush1.msra.mxu0 0.0
    %125 = vmatprep.subr.mxu0 0.0
    %126 = vmatpush1.msra.mxu0 0.0
    %127 = vmatprep.subr.mxu0 0.0
    %128 = vmatpush1.msra.mxu0 0.0
    %129 = vmatprep.subr.mxu0 0.0
    %130 = vmatpush1.msra.mxu0 0.0
    %131 = vmatprep.subr.mxu0 0.0
    %132 = vmatpush1.msra.mxu0 0.0
    %133 = vmatprep.subr.mxu0 0.0
    %134 = vmatpush1.msra.mxu0 0.0
    %135 = vmatprep.subr.mxu0 0.0
    %136 = vmatpush1.msra.mxu0 0.0
    %137 = vmatprep.subr.mxu0 0.0
    %138 = vmatpush1.msra.mxu0 0.0
    %139 = vmatprep.subr.mxu0 0.0
    %140 = vmatpush1.msra.mxu0 0.0
    %141 = vmatprep.subr.mxu0 0.0
    %142 = vmatpush1.msra.mxu0 0.0
    %143 = vmatprep.subr.mxu0 0.0
    %144 = vmatpush1.msra.mxu0 0.0
    %145 = vmatprep.subr.mxu0 0.0
    %146 = vmatpush1.msra.mxu0 0.0
    %147 = vmatprep.subr.mxu0 0.0
    %148 = vmatpush1.msra.mxu0 0.0
    %149 = vmatprep.subr.mxu0 0.0
    %150 = vmatpush1.msra.mxu0 0.0
    %151 = vmatprep.subr.mxu0 0.0
    %152 = vmatpush1.msra.mxu0 0.0
    %153 = vmatprep.mubr.f32.mxu0 0.0
    %154 = vmatmul.mubr.f32.gmra.mrb[0].mxu0 %v87
    %v155 = vpop.f32.mrb[0].mxu0
    %v156 = vadd.f32 0.0, %v155
    %v157 = vpop.f32.mrb[0].mxu0
    %158 = vdwg.mxu0
    %v159 = vmul.f32 %v156, %v156
    %v161 = vrot.slane %v159, 6
    %vm163 = vcmask 1041408
    %v164 = vsel %vm163, %v156, %v161
    %165 = vmatprep.subr.mxu0 0.0
    %166 = vmatpush1.xpose.msra.mxu0 %v75
    %167 = vmatprep.subr.mxu0 0.0
    %168 = vmatpush1.xpose.msra.mxu0 0.0
    %169 = vmatprep.subr.mxu0 0.0
    %170 = vmatpush1.xpose.msra.mxu0 0.0
    %171 = vmatprep.subr.mxu0 0.0
    %172 = vmatpush1.xpose.msra.mxu0 0.0
    %173 = vmatprep.subr.mxu0 0.0
    %174 = vmatpush1.xpose.msra.mxu0 0.0
    %175 = vmatprep.subr.mxu0 0.0
    %176 = vmatpush1.xpose.msra.mxu0 0.0
    %177 = vmatprep.subr.mxu0 0.0
    %178 = vmatpush1.xpose.msra.mxu0 0.0
    %179 = vmatprep.subr.mxu0 0.0
    %180 = vmatpush1.xpose.msra.mxu0 0.0
    %181 = vmatprep.subr.mxu0 0.0
    %182 = vmatpush1.xpose.msra.mxu0 0.0
    %183 = vmatprep.subr.mxu0 0.0
    %184 = vmatpush1.xpose.msra.mxu0 0.0
    %185 = vmatprep.subr.mxu0 0.0
    %186 = vmatpush1.xpose.msra.mxu0 0.0
    %187 = vmatprep.subr.mxu0 0.0
    %188 = vmatpush1.xpose.msra.mxu0 0.0
    %189 = vmatprep.subr.mxu0 0.0
    %190 = vmatpush1.xpose.msra.mxu0 0.0
    %191 = vmatprep.subr.mxu0 0.0
    %192 = vmatpush1.xpose.msra.mxu0 0.0
    %193 = vmatprep.subr.mxu0 0.0
    %194 = vmatpush1.xpose.msra.mxu0 0.0
    %195 = vmatprep.subr.mxu0 0.0
    %196 = vmatpush1.xpose.msra.mxu0 0.0
    %197 = vmatprep.subr.mxu0 0.0
    %198 = vmatpush1.xpose.msra.mxu0 0.0
    %199 = vmatprep.subr.mxu0 0.0
    %200 = vmatpush1.xpose.msra.mxu0 0.0
    %201 = vmatprep.subr.mxu0 0.0
    %202 = vmatpush1.xpose.msra.mxu0 0.0
    %203 = vmatprep.subr.mxu0 0.0
    %204 = vmatpush1.xpose.msra.mxu0 0.0
    %205 = vmatprep.subr.mxu0 0.0
    %206 = vmatpush1.xpose.msra.mxu0 0.0
    %207 = vmatprep.subr.mxu0 0.0
    %208 = vmatpush1.xpose.msra.mxu0 0.0
    %209 = vmatprep.subr.mxu0 0.0
    %210 = vmatpush1.xpose.msra.mxu0 0.0
    %211 = vmatprep.subr.mxu0 0.0
    %212 = vmatpush1.xpose.msra.mxu0 0.0
    %213 = vmatprep.subr.mxu0 0.0
    %214 = vmatpush1.xpose.msra.mxu0 0.0
    %215 = vmatprep.subr.mxu0 0.0
    %216 = vmatpush1.xpose.msra.mxu0 0.0
    %217 = vmatprep.subr.mxu0 0.0
    %218 = vmatpush1.xpose.msra.mxu0 0.0
    %219 = vmatprep.subr.mxu0 0.0
    %220 = vmatpush1.xpose.msra.mxu0 0.0
    %221 = vmatprep.subr.mxu0 0.0
    %222 = vmatpush1.xpose.msra.mxu0 0.0
    %223 = vmatprep.subr.mxu0 0.0
    %224 = vmatpush1.xpose.msra.mxu0 0.0
    %225 = vmatprep.subr.mxu0 0.0
    %226 = vmatpush1.xpose.msra.mxu0 0.0
    %227 = vmatprep.subr.mxu0 0.0
    %228 = vmatpush1.xpose.msra.mxu0 0.0
    %229 = vmatprep.mubr.f32.mxu0 0.0
    %230 = vmatmul.mubr.f32.gmra.mrb[0].mxu0 %v164
    %v231 = vpop.f32.mrb[0].mxu0
    %v232 = vadd.f32 0.0, %v231
    %v233 = vpop.f32.mrb[0].mxu0
    %234 = vdwg.mxu0
    %v236 = vrot.slane %v232, 1
    %v238 = vadd.f32 %v232, %v236
    %v239 = vmul.f32 %v238, 0.03125
    %v240 = vmul.f32 %v239, %v239
    %v242 = vrot.slane %v240, 6
    %v244 = vsub.f32 %v239, %v242
    %v245 = vadd.f32 %v244, 1e-05
    %v246 = vrsqrt.pop %v245
    %v247 = vmul.f32 %v80, %v246
    %v249 = vrot.slane %v247, 2
    %v251 = vmul.f32 %v239, %v249
    %v252 = vsub.f32 %v81, %v251
    %v254 = vrot.slane %v252, 7
    %vm256 = vcmask 1040384
    %v257 = vsel %vm256, %v249, %v254
    %vm258 = vcmask 64512
    %v260 = vsel %vm258, %v257, 0
    %262 = vmatprep.subr.mxu0 0.0
    %263 = vmatpush1.msra.mxu0 %v75
    %264 = vmatprep.subr.mxu0 0.0
    %265 = vmatpush1.msra.mxu0 0.0
    %266 = vmatprep.subr.mxu0 0.0
    %267 = vmatpush1.msra.mxu0 0.0
    %268 = vmatprep.subr.mxu0 0.0
    %269 = vmatpush1.msra.mxu0 0.0
    %270 = vmatprep.subr.mxu0 0.0
    %271 = vmatpush1.msra.mxu0 0.0
    %272 = vmatprep.subr.mxu0 0.0
    %273 = vmatpush1.msra.mxu0 0.0
    %274 = vmatprep.subr.mxu0 0.0
    %275 = vmatpush1.msra.mxu0 0.0
    %276 = vmatprep.subr.mxu0 0.0
    %277 = vmatpush1.msra.mxu0 0.0
    %278 = vmatprep.subr.mxu0 0.0
    %279 = vmatpush1.msra.mxu0 0.0
    %280 = vmatprep.subr.mxu0 0.0
    %281 = vmatpush1.msra.mxu0 0.0
    %282 = vmatprep.subr.mxu0 0.0
    %283 = vmatpush1.msra.mxu0 0.0
    %284 = vmatprep.subr.mxu0 0.0
    %285 = vmatpush1.msra.mxu0 0.0
    %286 = vmatprep.subr.mxu0 0.0
    %287 = vmatpush1.msra.mxu0 0.0
    %288 = vmatprep.subr.mxu0 0.0
    %289 = vmatpush1.msra.mxu0 0.0
    %290 = vmatprep.subr.mxu0 0.0
    %291 = vmatpush1.msra.mxu0 0.0
    %292 = vmatprep.subr.mxu0 0.0
    %293 = vmatpush1.msra.mxu0 0.0
    %294 = vmatprep.subr.mxu0 0.0
    %295 = vmatpush1.msra.mxu0 0.0
    %296 = vmatprep.subr.mxu0 0.0
    %297 = vmatpush1.msra.mxu0 0.0
    %298 = vmatprep.subr.mxu0 0.0
    %299 = vmatpush1.msra.mxu0 0.0
    %300 = vmatprep.subr.mxu0 0.0
    %301 = vmatpush1.msra.mxu0 0.0
    %302 = vmatprep.subr.mxu0 0.0
    %303 = vmatpush1.msra.mxu0 0.0
    %304 = vmatprep.subr.mxu0 0.0
    %305 = vmatpush1.msra.mxu0 0.0
    %306 = vmatprep.subr.mxu0 0.0
    %307 = vmatpush1.msra.mxu0 0.0
    %308 = vmatprep.subr.mxu0 0.0
    %309 = vmatpush1.msra.mxu0 0.0
    %310 = vmatprep.subr.mxu0 0.0
    %311 = vmatpush1.msra.mxu0 0.0
    %312 = vmatprep.subr.mxu0 0.0
    %313 = vmatpush1.msra.mxu0 0.0
    %314 = vmatprep.subr.mxu0 0.0
    %315 = vmatpush1.msra.mxu0 0.0
    %316 = vmatprep.subr.mxu0 0.0
    %317 = vmatpush1.msra.mxu0 0.0
    %318 = vmatprep.subr.mxu0 0.0
    %319 = vmatpush1.msra.mxu0 0.0
    %320 = vmatprep.subr.mxu0 0.0
    %321 = vmatpush1.msra.mxu0 0.0
    %322 = vmatprep.subr.mxu0 0.0
    %323 = vmatpush1.msra.mxu0 0.0
    %324 = vmatprep.subr.mxu0 0.0
    %325 = vmatpush1.msra.mxu0 0.0
    %326 = vmatprep.mubr.f32.mxu0 0.0
    %327 = vmatmul.mubr.f32.gmra.mrb[0].mxu0 %v260
    %v328 = vpop.f32.mrb[0].mxu0
    %v329 = vadd.f32 0.0, %v328
    %v330 = vpop.f32.mrb[0].mxu0
    %331 = vdwg.mxu0
    %v332 = vlaneseq
    %v333 = vshrl.u32 %v332, 7
    %v334 = vsub.s32 0, %v333
    %v335 = vrot.slane %v329, %v334
    %v336 = vmul.f32 %v156, %v335
    %v337 = vlaneseq
    %v338 = vshrl.u32 %v337, 7
    %v339 = vsub.s32 1, %v338
    %v340 = vrot.slane %v329, %v339
    %v341 = vadd.f32 %v336, %v340
    %v342 = vmax.f32 %v341, 0.0
    %343 = vmatprep.subr.mxu0 %v36
    %344 = vmatpush1.msra.mxu0 %v35
    %345 = vmatprep.subr.mxu0 %v38
    %346 = vmatpush1.msra.mxu0 %v37
    %347 = vmatprep.subr.mxu0 %v40
    %348 = vmatpush1.msra.mxu0 %v39
    %349 = vmatprep.subr.mxu0 %v42
    %350 = vmatpush1.msra.mxu0 %v41
    %351 = vmatprep.subr.mxu0 %v44
    %352 = vmatpush1.msra.mxu0 %v43
    %353 = vmatprep.subr.mxu0 %v46
    %354 = vmatpush1.msra.mxu0 %v45
    %355 = vmatprep.subr.mxu0 %v48
    %356 = vmatpush1.msra.mxu0 %v47
    %357 = vmatprep.subr.mxu0 %v50
    %358 = vmatpush1.msra.mxu0 %v49
    %359 = vmatprep.subr.mxu0 %v52
    %360 = vmatpush1.msra.mxu0 %v51
    %361 = vmatprep.subr.mxu0 %v54
    %362 = vmatpush1.msra.mxu0 %v53
    %363 = vmatprep.subr.mxu0 %v56
    %364 = vmatpush1.msra.mxu0 %v55
    %365 = vmatprep.subr.mxu0 %v58
    %366 = vmatpush1.msra.mxu0 %v57
    %367 = vmatprep.subr.mxu0 %v60
    %368 = vmatpush1.msra.mxu0 %v59
    %369 = vmatprep.subr.mxu0 %v62
    %370 = vmatpush1.msra.mxu0 %v61
    %371 = vmatprep.subr.mxu0 %v64
    %372 = vmatpush1.msra.mxu0 %v63
    %373 = vmatprep.subr.mxu0 %v66
    %374 = vmatpush1.msra.mxu0 %v65
    %375 = vmatprep.subr.mxu0 0.0
    %376 = vmatpush1.msra.mxu0 0.0
    %377 = vmatprep.subr.mxu0 0.0
    %378 = vmatpush1.msra.mxu0 0.0
    %379 = vmatprep.subr.mxu0 0.0
    %380 = vmatpush1.msra.mxu0 0.0
    %381 = vmatprep.subr.mxu0 0.0
    %382 = vmatpush1.msra.mxu0 0.0
    %383 = vmatprep.subr.mxu0 0.0
    %384 = vmatpush1.msra.mxu0 0.0
    %385 = vmatprep.subr.mxu0 0.0
    %386 = vmatpush1.msra.mxu0 0.0
    %387 = vmatprep.subr.mxu0 0.0
    %388 = vmatpush1.msra.mxu0 0.0
    %389 = vmatprep.subr.mxu0 0.0
    %390 = vmatpush1.msra.mxu0 0.0
    %391 = vmatprep.subr.mxu0 0.0
    %392 = vmatpush1.msra.mxu0 0.0
    %393 = vmatprep.subr.mxu0 0.0
    %394 = vmatpush1.msra.mxu0 0.0
    %395 = vmatprep.subr.mxu0 0.0
    %396 = vmatpush1.msra.mxu0 0.0
    %397 = vmatprep.subr.mxu0 0.0
    %398 = vmatpush1.msra.mxu0 0.0
    %399 = vmatprep.subr.mxu0 0.0
    %400 = vmatpush1.msra.mxu0 0.0
    %401 = vmatprep.subr.mxu0 0.0
    %402 = vmatpush1.msra.mxu0 0.0
    %403 = vmatprep.subr.mxu0 0.0
    %404 = vmatpush1.msra.mxu0 0.0
    %405 = vmatprep.subr.mxu0 0.0
    %406 = vmatpush1.msra.mxu0 0.0
    %407 = vmatprep.mubr.f32.mxu0 0.0
    %408 = vmatmul.mubr.f32.gmra.mrb[0].mxu0 %v342
    %v409 = vpop.f32.mrb[0].mxu0
    %v410 = vadd.f32 0.0, %v409
    %v411 = vpop.f32.mrb[0].mxu0
    %v412 = vadd.f32 0.0, %v411
    %413 = vdwg.mxu0
    %v414 = vmul.f32 %v410, %v410
    %v415 = vmul.f32 %v412, %v412
    %v418 = vrot.slane %v414, 6
    %v419 = vrot.slane %v415, 6
    %v422 = vsel %vm163, %v410, %v418
    %v423 = vsel %vm163, %v412, %v419
    %424 = vmatprep.subr.mxu0 %v77
    %425 = vmatpush1.xpose.msra.mxu0 %v76
    %426 = vmatprep.subr.mxu0 %v79
    %427 = vmatpush1.xpose.msra.mxu0 %v78
    %428 = vmatprep.subr.mxu0 0.0
    %429 = vmatpush1.xpose.msra.mxu0 0.0
    %430 = vmatprep.subr.mxu0 0.0
    %431 = vmatpush1.xpose.msra.mxu0 0.0
    %432 = vmatprep.subr.mxu0 0.0
    %433 = vmatpush1.xpose.msra.mxu0 0.0
    %434 = vmatprep.subr.mxu0 0.0
    %435 = vmatpush1.xpose.msra.mxu0 0.0
    %436 = vmatprep.subr.mxu0 0.0
    %437 = vmatpush1.xpose.msra.mxu0 0.0
    %438 = vmatprep.subr.mxu0 0.0
    %439 = vmatpush1.xpose.msra.mxu0 0.0
    %440 = vmatprep.subr.mxu0 0.0
    %441 = vmatpush1.xpose.msra.mxu0 0.0
    %442 = vmatprep.subr.mxu0 0.0
    %443 = vmatpush1.xpose.msra.mxu0 0.0
    %444 = vmatprep.subr.mxu0 0.0
    %445 = vmatpush1.xpose.msra.mxu0 0.0
    %446 = vmatprep.subr.mxu0 0.0
    %447 = vmatpush1.xpose.msra.mxu0 0.0
    %448 = vmatprep.subr.mxu0 0.0
    %449 = vmatpush1.xpose.msra.mxu0 0.0
    %450 = vmatprep.subr.mxu0 0.0
    %451 = vmatpush1.xpose.msra.mxu0 0.0
    %452 = vmatprep.subr.mxu0 0.0
    %453 = vmatpush1.xpose.msra.mxu0 0.0
    %454 = vmatprep.subr.mxu0 0.0
    %455 = vmatpush1.xpose.msra.mxu0 0.0
    %456 = vmatprep.subr.mxu0 0.0
    %457 = vmatpush1.xpose.msra.mxu0 0.0
    %458 = vmatprep.subr.mxu0 0.0
    %459 = vmatpush1.xpose.msra.mxu0 0.0
    %460 = vmatprep.subr.mxu0 0.0
    %461 = vmatpush1.xpose.msra.mxu0 0.0
    %462 = vmatprep.subr.mxu0 0.0
    %463 = vmatpush1.xpose.msra.mxu0 0.0
    %464 = vmatprep.subr.mxu0 0.0
    %465 = vmatpush1.xpose.msra.mxu0 0.0
    %466 = vmatprep.subr.mxu0 0.0
    %467 = vmatpush1.xpose.msra.mxu0 0.0
    %468 = vmatprep.subr.mxu0 0.0
    %469 = vmatpush1.xpose.msra.mxu0 0.0
    %470 = vmatprep.subr.mxu0 0.0
    %471 = vmatpush1.xpose.msra.mxu0 0.0
    %472 = vmatprep.subr.mxu0 0.0
    %473 = vmatpush1.xpose.msra.mxu0 0.0
    %474 = vmatprep.subr.mxu0 0.0
    %475 = vmatpush1.xpose.msra.mxu0 0.0
    %476 = vmatprep.subr.mxu0 0.0
    %477 = vmatpush1.xpose.msra.mxu0 0.0
    %478 = vmatprep.subr.mxu0 0.0
    %479 = vmatpush1.xpose.msra.mxu0 0.0
    %480 = vmatprep.subr.mxu0 0.0
    %481 = vmatpush1.xpose.msra.mxu0 0.0
    %482 = vmatprep.subr.mxu0 0.0
    %483 = vmatpush1.xpose.msra.mxu0 0.0
    %484 = vmatprep.subr.mxu0 0.0
    %485 = vmatpush1.xpose.msra.mxu0 0.0
    %486 = vmatprep.subr.mxu0 0.0
    %487 = vmatpush1.xpose.msra.mxu0 0.0
    %488 = vmatprep.mubr.f32.mxu0 %v423
    %489 = vmatmul.mubr.f32.gmra.mrb[0].mxu0 %v422
    %v490 = vpop.f32.mrb[0].mxu0
    %v491 = vadd.f32 0.0, %v490
    %v492 = vpop.f32.mrb[0].mxu0
    %493 = vdwg.mxu0
    %v495 = vrot.slane %v491, 1
    %v497 = vadd.f32 %v491, %v495
    %v498 = vmul.f32 %v497, 0.03125
    %v499 = vmul.f32 %v498, %v498
    %v501 = vrot.slane %v499, 6
    %v503 = vsub.f32 %v498, %v501
    %v504 = vadd.f32 %v503, 1e-05
    %v505 = vrsqrt.pop %v504
    %v506 = vmul.f32 %v82, %v505
    %v508 = vrot.slane %v506, 2
    %v510 = vmul.f32 %v498, %v508
    %v511 = vsub.f32 %v83, %v510
    %v513 = vrot.slane %v511, 7
    %v515 = vsel %vm256, %v508, %v513
    %vm516 = vcmask 130048
    %v518 = vsel %vm516, %v515, 0
    %520 = vmatprep.subr.mxu0 %v77
    %521 = vmatpush1.msra.mxu0 %v76
    %522 = vmatprep.subr.mxu0 %v79
    %523 = vmatpush1.msra.mxu0 %v78
    %524 = vmatprep.subr.mxu0 0.0
    %525 = vmatpush1.msra.mxu0 0.0
    %526 = vmatprep.subr.mxu0 0.0
    %527 = vmatpush1.msra.mxu0 0.0
    %528 = vmatprep.subr.mxu0 0.0
    %529 = vmatpush1.msra.mxu0 0.0
    %530 = vmatprep.subr.mxu0 0.0
    %531 = vmatpush1.msra.mxu0 0.0
    %532 = vmatprep.subr.mxu0 0.0
    %533 = vmatpush1.msra.mxu0 0.0
    %534 = vmatprep.subr.mxu0 0.0
    %535 = vmatpush1.msra.mxu0 0.0
    %536 = vmatprep.subr.mxu0 0.0
    %537 = vmatpush1.msra.mxu0 0.0
    %538 = vmatprep.subr.mxu0 0.0
    %539 = vmatpush1.msra.mxu0 0.0
    %540 = vmatprep.subr.mxu0 0.0
    %541 = vmatpush1.msra.mxu0 0.0
    %542 = vmatprep.subr.mxu0 0.0
    %543 = vmatpush1.msra.mxu0 0.0
    %544 = vmatprep.subr.mxu0 0.0
    %545 = vmatpush1.msra.mxu0 0.0
    %546 = vmatprep.subr.mxu0 0.0
    %547 = vmatpush1.msra.mxu0 0.0
    %548 = vmatprep.subr.mxu0 0.0
    %549 = vmatpush1.msra.mxu0 0.0
    %550 = vmatprep.subr.mxu0 0.0
    %551 = vmatpush1.msra.mxu0 0.0
    %552 = vmatprep.subr.mxu0 0.0
    %553 = vmatpush1.msra.mxu0 0.0
    %554 = vmatprep.subr.mxu0 0.0
    %555 = vmatpush1.msra.mxu0 0.0
    %556 = vmatprep.subr.mxu0 0.0
    %557 = vmatpush1.msra.mxu0 0.0
    %558 = vmatprep.subr.mxu0 0.0
    %559 = vmatpush1.msra.mxu0 0.0
    %560 = vmatprep.subr.mxu0 0.0
    %561 = vmatpush1.msra.mxu0 0.0
    %562 = vmatprep.subr.mxu0 0.0
    %563 = vmatpush1.msra.mxu0 0.0
    %564 = vmatprep.subr.mxu0 0.0
    %565 = vmatpush1.msra.mxu0 0.0
    %566 = vmatprep.subr.mxu0 0.0
    %567 = vmatpush1.msra.mxu0 0.0
    %568 = vmatprep.subr.mxu0 0.0
    %569 = vmatpush1.msra.mxu0 0.0
    %570 = vmatprep.subr.mxu0 0.0
    %571 = vmatpush1.msra.mxu0 0.0
    %572 = vmatprep.subr.mxu0 0.0
    %573 = vmatpush1.msra.mxu0 0.0
    %574 = vmatprep.subr.mxu0 0.0
    %575 = vmatpush1.msra.mxu0 0.0
    %576 = vmatprep.subr.mxu0 0.0
    %577 = vmatpush1.msra.mxu0 0.0
    %578 = vmatprep.subr.mxu0 0.0
    %579 = vmatpush1.msra.mxu0 0.0
    %580 = vmatprep.subr.mxu0 0.0
    %581 = vmatpush1.msra.mxu0 0.0
    %582 = vmatprep.subr.mxu0 0.0
    %583 = vmatpush1.msra.mxu0 0.0
    %584 = vmatprep.mubr.f32.mxu0 0.0
    %585 = vmatmul.mubr.f32.gmra.mrb[0].mxu0 %v518
    %v586 = vpop.f32.mrb[0].mxu0
    %v587 = vadd.f32 0.0, %v586
    %v588 = vpop.f32.mrb[0].mxu0
    %v589 = vadd.f32 0.0, %v588
    %590 = vdwg.mxu0
    %v591 = vlaneseq
    %v592 = vshrl.u32 %v591, 7
    %v593 = vsub.s32 0, %v592
    %v594 = vrot.slane %v587, %v593
    %v595 = vlaneseq
    %v596 = vshrl.u32 %v595, 7
    %v597 = vsub.s32 0, %v596
    %v598 = vrot.slane %v589, %v597
    %v599 = vmul.f32 %v410, %v594
    %v600 = vmul.f32 %v412, %v598
    %v601 = vlaneseq
    %v602 = vshrl.u32 %v601, 7
    %v603 = vsub.s32 1, %v602
    %v604 = vrot.slane %v587, %v603
    %v605 = vlaneseq
    %v606 = vshrl.u32 %v605, 7
    %v607 = vsub.s32 1, %v606
    %v608 = vrot.slane %v589, %v607
    %v609 = vadd.f32 %v599, %v604
    %v610 = vadd.f32 %v600, %v608
    %v611 = vmax.f32 %v609, 0.0
    %v612 = vmax.f32 %v610, 0.0
    %613 = vmatprep.subr.mxu0 %v68
    %614 = vmatpush1.xpose.msra.mxu0 %v67
    %615 = vmatprep.subr.mxu0 %v70
    %616 = vmatpush1.xpose.msra.mxu0 %v69
    %617 = vmatprep.subr.mxu0 %v72
    %618 = vmatpush1.xpose.msra.mxu0 %v71
    %619 = vmatprep.subr.mxu0 %v74
    %620 = vmatpush1.xpose.msra.mxu0 %v73
    %621 = vmatprep.subr.mxu0 0.0
    %622 = vmatpush1.xpose.msra.mxu0 0.0
    %623 = vmatprep.subr.mxu0 0.0
    %624 = vmatpush1.xpose.msra.mxu0 0.0
    %625 = vmatprep.subr.mxu0 0.0
    %626 = vmatpush1.xpose.msra.mxu0 0.0
    %627 = vmatprep.subr.mxu0 0.0
    %628 = vmatpush1.xpose.msra.mxu0 0.0
    %629 = vmatprep.subr.mxu0 0.0
    %630 = vmatpush1.xpose.msra.mxu0 0.0
    %631 = vmatprep.subr.mxu0 0.0
    %632 = vmatpush1.xpose.msra.mxu0 0.0
    %633 = vmatprep.subr.mxu0 0.0
    %634 = vmatpush1.xpose.msra.mxu0 0.0
    %635 = vmatprep.subr.mxu0 0.0
    %636 = vmatpush1.xpose.msra.mxu0 0.0
    %637 = vmatprep.subr.mxu0 0.0
    %638 = vmatpush1.xpose.msra.mxu0 0.0
    %639 = vmatprep.subr.mxu0 0.0
    %640 = vmatpush1.xpose.msra.mxu0 0.0
    %641 = vmatprep.subr.mxu0 0.0
    %642 = vmatpush1.xpose.msra.mxu0 0.0
    %643 = vmatprep.subr.mxu0 0.0
    %644 = vmatpush1.xpose.msra.mxu0 0.0
    %645 = vmatprep.subr.mxu0 0.0
    %646 = vmatpush1.xpose.msra.mxu0 0.0
    %647 = vmatprep.subr.mxu0 0.0
    %648 = vmatpush1.xpose.msra.mxu0 0.0
    %649 = vmatprep.subr.mxu0 0.0
    %650 = vmatpush1.xpose.msra.mxu0 0.0
    %651 = vmatprep.subr.mxu0 0.0
    %652 = vmatpush1.xpose.msra.mxu0 0.0
    %653 = vmatprep.subr.mxu0 0.0
    %654 = vmatpush1.xpose.msra.mxu0 0.0
    %655 = vmatprep.subr.mxu0 0.0
    %656 = vmatpush1.xpose.msra.mxu0 0.0
    %657 = vmatprep.subr.mxu0 0.0
    %658 = vmatpush1.xpose.msra.mxu0 0.0
    %659 = vmatprep.subr.mxu0 0.0
    %660 = vmatpush1.xpose.msra.mxu0 0.0
    %661 = vmatprep.subr.mxu0 0.0
    %662 = vmatpush1.xpose.msra.mxu0 0.0
    %663 = vmatprep.subr.mxu0 0.0
    %664 = vmatpush1.xpose.msra.mxu0 0.0
    %665 = vmatprep.subr.mxu0 0.0
    %666 = vmatpush1.xpose.msra.mxu0 0.0
    %667 = vmatprep.subr.mxu0 0.0
    %668 = vmatpush1.xpose.msra.mxu0 0.0
    %669 = vmatprep.subr.mxu0 0.0
    %670 = vmatpush1.xpose.msra.mxu0 0.0
    %671 = vmatprep.subr.mxu0 0.0
    %672 = vmatpush1.xpose.msra.mxu0 0.0
    %673 = vmatprep.subr.mxu0 0.0
    %674 = vmatpush1.xpose.msra.mxu0 0.0
    %675 = vmatprep.subr.mxu0 0.0
    %676 = vmatpush1.xpose.msra.mxu0 0.0
    %677 = vmatprep.mubr.f32.mxu0 %v612
    %678 = vmatmul.mubr.f32.gmra.mrb[0].mxu0 %v611
    %v679 = vpop.f32.mrb[0].mxu0
    %v680 = vadd.f32 %v84, %v679
    %v681 = vpop.f32.mrb[0].mxu0
    %682 = vdwg.mxu0
    %vm683 = vcmask 254976
    %684 = vst.msk [vmem:[#allocation5] sm:$0x3] %vm683, %v680
    // Predicated region
    $region14: #{_fwd.1} parent=1 // pred_check
      _
    $region15: #{_fwd.1} parent=1 // pred_check_branch
      %686 = sbr.rel (0) target = $region17
    $region16: #{_fwd.1} parent=1 // pred_region
      %s688 = ssub.s32 32, 32
      %689 = vsyncadd [#allocation4], %s688
      %s691 = sshll.u32 [#allocation5], 4
      %s692 = int_to_ptr.vmem [resolvable:$true] %s691
      %694 = dma.vmem_to_hbm [thread:$0]  %s692, 32, %s2, [#allocation4]
    $region17: #{_fwd.1} parent=1 // pred_fallthru
      _
    // Predicated region
    $region18: #{_fwd.1} parent=1 // pred_check
      _
    $region19: #{_fwd.1} parent=1 // pred_check_branch
      %696 = sbr.rel (0) target = $region21
    $region20: #{_fwd.1} parent=1 // pred_region
      %697 = dma.done [#allocation4], 32
    $region21: #{_fwd.1} parent=1 // pred_fallthru
      _
    %698 = vsyncpa [#allocation3], 1
    %699 = vsyncpa [#allocation4], 1

</llo_original>
